<compile_context>
chip_gen: v6e
topology: v6e:2x2x1
jax: 0.10.0
libtpu: 0.0.40
codegen_flags: <defaults>
</compile_context>

<pallas_src>
import functools

import jax
import jax.numpy as jnp
from jax.experimental import pallas as pl
from jax.experimental.pallas import tpu as pltpu

NEG_SLOPE = 0.01  # nn.LeakyReLU() default
LANE = 128
SUBLANE = 8


def _round_up(x, m):
    return ((x + m - 1) // m) * m


def _mlp_encoder_kernel(n_layers, n_hidden_layers, mxu_dtype, use_scratch, *refs):
    """Fused MLP kernel.

    refs = (x_ref, w0, b0, ..., w{L-1}, b{L-1}, out_ref, h_scratch)
    Hidden layers (all but the last 'Code_Linear') apply LeakyReLU.
    """
    x_ref = refs[0]
    param_refs = refs[1:1 + 2 * n_layers]
    out_ref = refs[1 + 2 * n_layers]
    h_scratch = refs[2 + 2 * n_layers]

    h = x_ref[...].astype(jnp.float32)
    for i in range(n_layers):
        w_ref = param_refs[2 * i]
        b_ref = param_refs[2 * i + 1]
        # Feed the MXU narrower operands (bf16 by default), accumulate in f32.
        a = h.astype(mxu_dtype)
        w = w_ref[...].astype(mxu_dtype)
        h = jnp.dot(a, w, preferred_element_type=jnp.float32)
        h = h + b_ref[...].astype(jnp.float32)          # f32 epilogue (v5e-safe)
        if i < n_hidden_layers:
            h = jnp.where(h >= 0.0, h, NEG_SLOPE * h)   # LeakyReLU, f32
        if use_scratch and i < n_layers - 1:
            # Stage wide hidden activations through VMEM to bound vreg pressure.
            w_out = h.shape[1]
            h_scratch[:, :w_out] = h
            h = h_scratch[:, :w_out]
    out_ref[...] = h.astype(out_ref.dtype)


def ae_enc_forward(x, weights, biases, latent_dims, *,
                   mxu_dtype=jnp.bfloat16, tile_b=None):
    """Encoder forward pass as a single fused, batch-tiled pallas_call.

    x       : (B, layer_dims[0]) float32
    weights : list of (in, out) float32 arrays
    biases  : list of (1, out)  float32 arrays
    returns : (B, latent_dims) float32
    """
    B, d_in = x.shape
    n_layers = len(weights)
    n_hidden_layers = n_layers - 1

    in_dims = [w.shape[0] for w in weights]
    out_dims = [w.shape[1] for w in weights]
    assert in_dims[0] == d_in and out_dims[-1] == latent_dims

    # --- pad every feature dim to a 128-lane multiple (lane-dense, full MXU tiles) ---
    in_pad = [_round_up(d, LANE) for d in in_dims]
    out_pad = [_round_up(d, LANE) for d in out_dims]
    x_p = jnp.pad(x, ((0, 0), (0, in_pad[0] - d_in)))
    w_p = [jnp.pad(w, ((0, ip - w.shape[0]), (0, op - w.shape[1])))
           for w, ip, op in zip(weights, in_pad, out_pad)]
    b_p = [jnp.pad(b, ((0, 0), (0, op - b.shape[1])))
           for b, op in zip(biases, out_pad)]

    # --- batch tiling: grid over batch, weights stay resident ---
    if tile_b is None:
        tile_b = min(128, _round_up(B, SUBLANE))
    tile_b = _round_up(tile_b, SUBLANE)
    b_pad_total = _round_up(B, tile_b)
    if b_pad_total != B:
        x_p = jnp.pad(x_p, ((0, b_pad_total - B), (0, 0)))
    grid = (pl.cdiv(b_pad_total, tile_b),)

    args = [x_p]
    in_specs = [pl.BlockSpec((tile_b, in_pad[0]), lambda i: (i, 0))]
    for w, b, ip, op in zip(w_p, b_p, in_pad, out_pad):
        args += [w, b]
        in_specs += [
            pl.BlockSpec((ip, op), lambda i: (0, 0)),   # weight: VMEM-resident
            pl.BlockSpec((1, op), lambda i: (0, 0)),    # bias:   VMEM-resident
        ]
    out_spec = pl.BlockSpec((tile_b, out_pad[-1]), lambda i: (i, 0))

    # Hidden-activation scratch (used only when layers are wide enough to matter).
    scratch_w = max(out_pad[:-1], default=LANE)
    use_scratch = scratch_w > 512

    # --- explicit VMEM budget: resident weights + double-buffered act tiles + scratch ---
    weight_bytes = sum(w.size * w.dtype.itemsize for w in w_p)
    weight_bytes += sum(b.size * b.dtype.itemsize for b in b_p)
    act_tile_bytes = tile_b * (in_pad[0] + out_pad[-1]) * 4
    scratch_bytes = tile_b * scratch_w * 4
    vmem_limit = int(2 * weight_bytes + 2 * 2 * act_tile_bytes + scratch_bytes + (4 << 20))
    vmem_limit = min(vmem_limit, 96 << 20)
    # TODO(synk): on v7x (64 MiB VMEM/TC) shrink tile_b / K-tile the largest layer
    #             (or store weights bf16/fp8) if resident bytes exceed ~48 MiB.

    kernel = functools.partial(
        _mlp_encoder_kernel, n_layers, n_hidden_layers, mxu_dtype, use_scratch)

    out = pl.pallas_call(
        kernel,
        out_shape=jax.ShapeDtypeStruct((b_pad_total, out_pad[-1]), jnp.float32),
        grid=grid,
        in_specs=in_specs,
        out_specs=out_spec,
        scratch_shapes=[pltpu.VMEM((tile_b, scratch_w), jnp.float32)],
        compiler_params=pltpu.CompilerParams(
            dimension_semantics=("parallel",),
            vmem_limit_bytes=vmem_limit),
    )(*args)

    return out[:B, :latent_dims]


def init_params(key, layer_dims, latent_dims):
    """Deterministic init matching nn.Linear's U(-1/sqrt(fan_in), 1/sqrt(fan_in))."""
    dims = list(layer_dims) + [latent_dims]
    weights, biases = [], []
    for d_in, d_out in zip(dims[:-1], dims[1:]):
        key, kw, kb = jax.random.split(key, 3)
        bound = 1.0 / (d_in ** 0.5)
        w = jax.random.uniform(kw, (d_in, d_out), jnp.float32, -bound, bound)  # W.T
        b = jax.random.uniform(kb, (1, d_out), jnp.float32, -bound, bound)
        weights.append(w)
        biases.append(b)
    return weights, biases


def reference_forward(x, weights, biases, n_hidden_layers):
    h = x
    for i, (w, b) in enumerate(zip(weights, biases)):
        h = h @ w + b
        if i < n_hidden_layers:
            h = jnp.where(h >= 0.0, h, NEG_SLOPE * h)
    return h


if __name__ == "__main__":
    layer_dims = [32, 64, 48]
    latent_dims = 2
    batch = 8

    key = jax.random.PRNGKey(0)
    key, kx = jax.random.split(key)
    x = jax.random.normal(kx, (batch, layer_dims[0]), jnp.float32)
    weights, biases = init_params(key, layer_dims, latent_dims)
    n_hidden = len(layer_dims) - 1

    # 1) default bf16-MXU path at the toy size (loose tol vs f32 reference).
    code = ae_enc_forward(x, weights, biases, latent_dims)
    code = jax.block_until_ready(code)
    ref = reference_forward(x, weights, biases, n_hidden)
    assert code.shape == (batch, latent_dims)
    assert jnp.allclose(code, ref, atol=5e-2, rtol=5e-2), "bf16 path mismatch vs reference"

    # 2) f32-MXU path with a multi-tile grid (batch not a tile multiple) -> exercises
    #    batch padding, pipelining, and lane-dense padded output slicing.
    batch2 = 300
    key, kx2 = jax.random.split(key)
    x2 = jax.random.normal(kx2, (batch2, layer_dims[0]), jnp.float32)
    code2 = ae_enc_forward(x2, weights, biases, latent_dims, mxu_dtype=jnp.float32)
    code2 = jax.block_until_ready(code2)
    ref2 = reference_forward(x2, weights, biases, n_hidden)
    assert code2.shape == (batch2, latent_dims)
    assert jnp.allclose(code2, ref2, atol=1e-5, rtol=1e-5), "f32 path mismatch vs reference"

    print("KERNEL_OK")
</pallas_src>

<mosaic_0001>
module attributes {stable_mosaic.version = 11 : i64} {
  func.func @_mlp_encoder_kernel(%arg0: i32, %arg1: memref<8x128xf32, #tpu.memory_space<vmem>>, %arg2: memref<128x128xf32, #tpu.memory_space<vmem>>, %arg3: memref<1x128xf32, #tpu.memory_space<vmem>>, %arg4: memref<128x128xf32, #tpu.memory_space<vmem>>, %arg5: memref<1x128xf32, #tpu.memory_space<vmem>>, %arg6: memref<128x128xf32, #tpu.memory_space<vmem>>, %arg7: memref<1x128xf32, #tpu.memory_space<vmem>>, %arg8: memref<8x128xf32, #tpu.memory_space<vmem>>, %arg9: memref<8x128xf32, #tpu.memory_space<vmem>>) attributes {dimension_semantics = [#tpu.dimension_semantics<parallel>], iteration_bounds = array<i64: 1>, scalar_prefetch = 0 : i64, scratch_operands = 1 : i64, tpu.core_type = #tpu.core_type<tc>, window_params = [{transform_indices = @transform_0, window_bounds = array<i64: 8, 128>}, {pipeline_mode = #tpu.pipeline_mode<synchronous>, transform_indices = @transform_1, window_bounds = array<i64: 128, 128>}, {pipeline_mode = #tpu.pipeline_mode<synchronous>, transform_indices = @transform_2, window_bounds = array<i64: 1, 128>}, {pipeline_mode = #tpu.pipeline_mode<synchronous>, transform_indices = @transform_3, window_bounds = array<i64: 128, 128>}, {pipeline_mode = #tpu.pipeline_mode<synchronous>, transform_indices = @transform_4, window_bounds = array<i64: 1, 128>}, {pipeline_mode = #tpu.pipeline_mode<synchronous>, transform_indices = @transform_5, window_bounds = array<i64: 128, 128>}, {pipeline_mode = #tpu.pipeline_mode<synchronous>, transform_indices = @transform_6, window_bounds = array<i64: 1, 128>}, {transform_indices = @transform_7, window_bounds = array<i64: 8, 128>}]} {
    %c0 = arith.constant 0 : index
    %c0_0 = arith.constant 0 : index
    %0 = vector.load %arg1[%c0, %c0_0] : memref<8x128xf32, #tpu.memory_space<vmem>>, vector<8x128xf32>
    %1 = arith.truncf %0 : vector<8x128xf32> to vector<8x128xbf16>
    %c0_1 = arith.constant 0 : index
    %c0_2 = arith.constant 0 : index
    %2 = vector.load %arg2[%c0_1, %c0_2] : memref<128x128xf32, #tpu.memory_space<vmem>>, vector<128x128xf32>
    %3 = arith.truncf %2 : vector<128x128xf32> to vector<128x128xbf16>
    %cst = arith.constant dense<0.000000e+00> : vector<8x128xf32>
    %4 = tpu.matmul %1, %3, %cst {dimension_numbers = #tpu.dot_dimension_numbers<[1], [0], [0], [1], [0, 0, 1, 1], [], []>} : vector<8x128xbf16>, vector<128x128xbf16>, vector<8x128xf32> -> vector<8x128xf32>
    %c0_3 = arith.constant 0 : index
    %c0_4 = arith.constant 0 : index
    %5 = vector.load %arg3[%c0_3, %c0_4] : memref<1x128xf32, #tpu.memory_space<vmem>>, vector<1x128xf32>
    %6 = vector.broadcast %5 : vector<1x128xf32> to vector<8x128xf32>
    %7 = arith.addf %4, %6 : vector<8x128xf32>
    %cst_5 = arith.constant 0.000000e+00 : f32
    %8 = vector.broadcast %cst_5 : f32 to vector<8x128xf32>
    %9 = arith.cmpf oge, %7, %8 : vector<8x128xf32>
    %cst_6 = arith.constant 0.00999999977 : f32
    %10 = vector.broadcast %cst_6 : f32 to vector<8x128xf32>
    %11 = arith.mulf %10, %7 : vector<8x128xf32>
    %12 = arith.select %9, %7, %11 : vector<8x128xi1>, vector<8x128xf32>
    %13 = arith.truncf %12 : vector<8x128xf32> to vector<8x128xbf16>
    %c0_7 = arith.constant 0 : index
    %c0_8 = arith.constant 0 : index
    %14 = vector.load %arg4[%c0_7, %c0_8] : memref<128x128xf32, #tpu.memory_space<vmem>>, vector<128x128xf32>
    %15 = arith.truncf %14 : vector<128x128xf32> to vector<128x128xbf16>
    %cst_9 = arith.constant dense<0.000000e+00> : vector<8x128xf32>
    %16 = tpu.matmul %13, %15, %cst_9 {dimension_numbers = #tpu.dot_dimension_numbers<[1], [0], [0], [1], [0, 0, 1, 1], [], []>} : vector<8x128xbf16>, vector<128x128xbf16>, vector<8x128xf32> -> vector<8x128xf32>
    %c0_10 = arith.constant 0 : index
    %c0_11 = arith.constant 0 : index
    %17 = vector.load %arg5[%c0_10, %c0_11] : memref<1x128xf32, #tpu.memory_space<vmem>>, vector<1x128xf32>
    %18 = vector.broadcast %17 : vector<1x128xf32> to vector<8x128xf32>
    %19 = arith.addf %16, %18 : vector<8x128xf32>
    %cst_12 = arith.constant 0.000000e+00 : f32
    %20 = vector.broadcast %cst_12 : f32 to vector<8x128xf32>
    %21 = arith.cmpf oge, %19, %20 : vector<8x128xf32>
    %cst_13 = arith.constant 0.00999999977 : f32
    %22 = vector.broadcast %cst_13 : f32 to vector<8x128xf32>
    %23 = arith.mulf %22, %19 : vector<8x128xf32>
    %24 = arith.select %21, %19, %23 : vector<8x128xi1>, vector<8x128xf32>
    %25 = arith.truncf %24 : vector<8x128xf32> to vector<8x128xbf16>
    %c0_14 = arith.constant 0 : index
    %c0_15 = arith.constant 0 : index
    %26 = vector.load %arg6[%c0_14, %c0_15] : memref<128x128xf32, #tpu.memory_space<vmem>>, vector<128x128xf32>
    %27 = arith.truncf %26 : vector<128x128xf32> to vector<128x128xbf16>
    %cst_16 = arith.constant dense<0.000000e+00> : vector<8x128xf32>
    %28 = tpu.matmul %25, %27, %cst_16 {dimension_numbers = #tpu.dot_dimension_numbers<[1], [0], [0], [1], [0, 0, 1, 1], [], []>} : vector<8x128xbf16>, vector<128x128xbf16>, vector<8x128xf32> -> vector<8x128xf32>
    %c0_17 = arith.constant 0 : index
    %c0_18 = arith.constant 0 : index
    %29 = vector.load %arg7[%c0_17, %c0_18] : memref<1x128xf32, #tpu.memory_space<vmem>>, vector<1x128xf32>
    %30 = vector.broadcast %29 : vector<1x128xf32> to vector<8x128xf32>
    %31 = arith.addf %28, %30 : vector<8x128xf32>
    %c0_19 = arith.constant 0 : index
    %c0_20 = arith.constant 0 : index
    %32 = vector.load %arg8[%c0_19, %c0_20] : memref<8x128xf32, #tpu.memory_space<vmem>>, vector<8x128xf32>
    tpu.vector_store %arg8[%c0_19, %c0_20], %31 {strides = array<i32>} : memref<8x128xf32, #tpu.memory_space<vmem>>, vector<8x128xf32>,
    return
  }
  func.func @transform_0(%arg0: i32) -> (i32, i32) {
    %c0_i32 = arith.constant 0 : i32
    %c0_i32_0 = arith.constant 0 : i32
    return %arg0, %c0_i32 : i32, i32
  }
  func.func @transform_1(%arg0: i32) -> (i32, i32) {
    %c0_i32 = arith.constant 0 : i32
    %c0_i32_0 = arith.constant 0 : i32
    %c0_i32_1 = arith.constant 0 : i32
    return %c0_i32, %c0_i32_0 : i32, i32
  }
  func.func @transform_2(%arg0: i32) -> (i32, i32) {
    %c0_i32 = arith.constant 0 : i32
    %c0_i32_0 = arith.constant 0 : i32
    %c0_i32_1 = arith.constant 0 : i32
    return %c0_i32, %c0_i32_0 : i32, i32
  }
  func.func @transform_3(%arg0: i32) -> (i32, i32) {
    %c0_i32 = arith.constant 0 : i32
    %c0_i32_0 = arith.constant 0 : i32
    %c0_i32_1 = arith.constant 0 : i32
    return %c0_i32, %c0_i32_0 : i32, i32
  }
  func.func @transform_4(%arg0: i32) -> (i32, i32) {
    %c0_i32 = arith.constant 0 : i32
    %c0_i32_0 = arith.constant 0 : i32
    %c0_i32_1 = arith.constant 0 : i32
    return %c0_i32, %c0_i32_0 : i32, i32
  }
  func.func @transform_5(%arg0: i32) -> (i32, i32) {
    %c0_i32 = arith.constant 0 : i32
    %c0_i32_0 = arith.constant 0 : i32
    %c0_i32_1 = arith.constant 0 : i32
    return %c0_i32, %c0_i32_0 : i32, i32
  }
  func.func @transform_6(%arg0: i32) -> (i32, i32) {
    %c0_i32 = arith.constant 0 : i32
    %c0_i32_0 = arith.constant 0 : i32
    %c0_i32_1 = arith.constant 0 : i32
    return %c0_i32, %c0_i32_0 : i32, i32
  }
  func.func @transform_7(%arg0: i32) -> (i32, i32) {
    %c0_i32 = arith.constant 0 : i32
    %c0_i32_0 = arith.constant 0 : i32
    return %arg0, %c0_i32 : i32, i32
  }
}

</mosaic_0001>

<llo_original>
// kernel: tpu_custom_call.1
$region0: #{tpu_custom_call.1}
  #allocation0 [shape = 'u32[]', space=smem, size = 0x4, offset = 0x4, fixed_abs, tag = 'smem constant byte address 0x4 - core index']
  #allocation1 [shape = 'u32[144,128]{1,0:T(1,128)}', space=vmem, size = 0x12000, scoped, tag = 'internal scratch']
  #allocation2 [shape = 'f32[8,128]{1,0:T(8,128)}', space=vmem, size = 0x1000, scoped, tag = 'scratch operand']
  %s0 = inlined_call_operand.hbm [shape: f32[8,128], index: 0, kind: input, shape index: {}]
  %s1 = inlined_call_operand.hbm [shape: f32[128,128], index: 1, kind: input, shape index: {}]
  %s2 = inlined_call_operand.vmem [shape: f32[1,128], index: 2, kind: input, shape index: {}]
  %s3 = inlined_call_operand.hbm [shape: f32[128,128], index: 3, kind: input, shape index: {}]
  %s4 = inlined_call_operand.vmem [shape: f32[1,128], index: 4, kind: input, shape index: {}]
  %s5 = inlined_call_operand.hbm [shape: f32[128,128], index: 5, kind: input, shape index: {}]
  %s6 = inlined_call_operand.vmem [shape: f32[1,128], index: 6, kind: input, shape index: {}]
  %s7 = inlined_call_operand.hbm [shape: f32[8,128], index: 7, kind: output, shape index: {}]
  %s8 = sld [smem:[#allocation0]]
  $region54: #{tpu_custom_call.1} parent=0
    _
  %s10 = ssub.s32 1, %s8
  %s11 = scalar_select 0, %s10, %s8
  $region1: #{tpu_custom_call.1} parent=0
    #allocation3 [shape = 'u8[4096]{0}', space=vmem, size = 0x1000, scoped, tag = 'input window, operand 0, single buffered']
    #allocation4 [shape = 's32[1]{0}', space=sflag, size = 0x4, scoped, tag = 'scoped memory for tpu_custom_call.1']
    #allocation5 [shape = 's32[1]{0}', space=sflag, size = 0x4, scoped, tag = 'scoped memory for tpu_custom_call.1']
    #allocation6 [shape = 'u8[65536]{0}', space=vmem, size = 0x10000, scoped, tag = 'input window, operand 1, single buffered']
    #allocation7 [shape = 's32[1]{0}', space=sflag, size = 0x4, scoped, tag = 'scoped memory for tpu_custom_call.1']
    #allocation8 [shape = 'u8[65536]{0}', space=vmem, size = 0x10000, scoped, tag = 'input window, operand 3, single buffered']
    #allocation9 [shape = 'u8[65536]{0}', space=vmem, size = 0x10000, scoped, tag = 'input window, operand 5, single buffered']
    #allocation10 [shape = 's32[1]{0}', space=sflag, size = 0x4, scoped, tag = 'scoped memory for tpu_custom_call.1']
    #allocation11 [shape = 'u8[4096]{0}', space=vmem, size = 0x1000, scoped, tag = 'output window, operand 0, single buffered']
    %12 = vsyncpa [#allocation4], 0
    %13 = vsyncpa [#allocation7], 0
    %14 = vsyncpa [#allocation10], 0
    %15 = vsyncpa [#allocation5], 0
    // Predicated region
    $region2: #{tpu_custom_call.1} parent=1 // pred_check
      _
    $region3: #{tpu_custom_call.1} parent=1 // pred_check_branch
      %17 = sbr.rel (0) target = $region5
    $region4: #{tpu_custom_call.1} parent=1 // pred_region
      %s19 = ssub.s32 128, 128
      %20 = vsyncadd [#allocation4], %s19
      %s22 = sshll.u32 [#allocation3], 4
      %s23 = int_to_ptr.vmem [resolvable:$true] %s22
      %25 = dma.hbm_to_vmem [thread:$0]  %s0, 128, %s23, [#allocation4]
    $region5: #{tpu_custom_call.1} parent=1 // pred_fallthru
      _
    // Predicated region
    $region6: #{tpu_custom_call.1} parent=1 // pred_check
      _
    $region7: #{tpu_custom_call.1} parent=1 // pred_check_branch
      %27 = sbr.rel (0) target = $region9
    $region8: #{tpu_custom_call.1} parent=1 // pred_region
      %s29 = ssub.s32 2048, 2048
      %30 = vsyncadd [#allocation7], %s29
      %s31 = sshll.u32 [#allocation6], 4
      %s32 = int_to_ptr.vmem [resolvable:$true] %s31
      %37 = dma.hbm_to_vmem [thread:$0]  %s1, 2048, %s32, [#allocation7], 128, 128, 8
    $region9: #{tpu_custom_call.1} parent=1 // pred_fallthru
      _
    // Predicated region
    $region10: #{tpu_custom_call.1} parent=1 // pred_check
      _
    $region11: #{tpu_custom_call.1} parent=1 // pred_check_branch
      %39 = sbr.rel (0) target = $region13
    $region12: #{tpu_custom_call.1} parent=1 // pred_region
      _
    $region13: #{tpu_custom_call.1} parent=1 // pred_fallthru
      _
    // Predicated region
    $region14: #{tpu_custom_call.1} parent=1 // pred_check
      _
    $region15: #{tpu_custom_call.1} parent=1 // pred_check_branch
      %41 = sbr.rel (0) target = $region17
    $region16: #{tpu_custom_call.1} parent=1 // pred_region
      %s43 = ssub.s32 2048, 2048
      %44 = vsyncadd [#allocation7], %s43
      %s45 = sshll.u32 [#allocation8], 4
      %s46 = int_to_ptr.vmem [resolvable:$true] %s45
      %51 = dma.hbm_to_vmem [thread:$0]  %s3, 2048, %s46, [#allocation7], 128, 128, 8
    $region17: #{tpu_custom_call.1} parent=1 // pred_fallthru
      _
    // Predicated region
    $region18: #{tpu_custom_call.1} parent=1 // pred_check
      _
    $region19: #{tpu_custom_call.1} parent=1 // pred_check_branch
      %53 = sbr.rel (0) target = $region21
    $region20: #{tpu_custom_call.1} parent=1 // pred_region
      _
    $region21: #{tpu_custom_call.1} parent=1 // pred_fallthru
      _
    // Predicated region
    $region22: #{tpu_custom_call.1} parent=1 // pred_check
      _
    $region23: #{tpu_custom_call.1} parent=1 // pred_check_branch
      %55 = sbr.rel (0) target = $region25
    $region24: #{tpu_custom_call.1} parent=1 // pred_region
      %s57 = ssub.s32 2048, 2048
      %58 = vsyncadd [#allocation10], %s57
      %s59 = sshll.u32 [#allocation9], 4
      %s60 = int_to_ptr.vmem [resolvable:$true] %s59
      %65 = dma.hbm_to_vmem [thread:$0]  %s5, 2048, %s60, [#allocation10], 128, 128, 8
    $region25: #{tpu_custom_call.1} parent=1 // pred_fallthru
      _
    // Predicated region
    $region26: #{tpu_custom_call.1} parent=1 // pred_check
      _
    $region27: #{tpu_custom_call.1} parent=1 // pred_check_branch
      %67 = sbr.rel (0) target = $region29
    $region28: #{tpu_custom_call.1} parent=1 // pred_region
      _
    $region29: #{tpu_custom_call.1} parent=1 // pred_fallthru
      _
    // Predicated region
    $region30: #{tpu_custom_call.1} parent=1 // pred_check
      _
    $region31: #{tpu_custom_call.1} parent=1 // pred_check_branch
      %69 = sbr.rel (0) target = $region33
    $region32: #{tpu_custom_call.1} parent=1 // pred_region
      %70 = dma.done [#allocation4], 128
    $region33: #{tpu_custom_call.1} parent=1 // pred_fallthru
      _
    // Predicated region
    $region34: #{tpu_custom_call.1} parent=1 // pred_check
      _
    $region35: #{tpu_custom_call.1} parent=1 // pred_check_branch
      %72 = sbr.rel (0) target = $region37
    $region36: #{tpu_custom_call.1} parent=1 // pred_region
      %73 = dma.done [#allocation7], 2048
    $region37: #{tpu_custom_call.1} parent=1 // pred_fallthru
      _
    // Predicated region
    $region38: #{tpu_custom_call.1} parent=1 // pred_check
      _
    $region39: #{tpu_custom_call.1} parent=1 // pred_check_branch
      %75 = sbr.rel (0) target = $region41
    $region40: #{tpu_custom_call.1} parent=1 // pred_region
      %76 = dma.done [#allocation7], 2048
    $region41: #{tpu_custom_call.1} parent=1 // pred_fallthru
      _
    // Predicated region
    $region42: #{tpu_custom_call.1} parent=1 // pred_check
      _
    $region43: #{tpu_custom_call.1} parent=1 // pred_check_branch
      %78 = sbr.rel (0) target = $region45
    $region44: #{tpu_custom_call.1} parent=1 // pred_region
      %79 = dma.done [#allocation10], 2048
    $region45: #{tpu_custom_call.1} parent=1 // pred_fallthru
      _
    %v81 = vld [vmem:[#allocation3] sm:$0xff]
    %v82 = vpack.c.bf16 %v81, %v81
    %v83 = vld [vmem:[#allocation6] sm:$0xff]
    %v84 = vld [vmem:[#allocation6 + $0x8] sm:$0xff]
    %v85 = vld [vmem:[#allocation6 + $0x10] sm:$0xff]
    %v86 = vld [vmem:[#allocation6 + $0x18] sm:$0xff]
    %v87 = vld [vmem:[#allocation6 + $0x20] sm:$0xff]
    %v88 = vld [vmem:[#allocation6 + $0x28] sm:$0xff]
    %v89 = vld [vmem:[#allocation6 + $0x30] sm:$0xff]
    %v90 = vld [vmem:[#allocation6 + $0x38] sm:$0xff]
    %v91 = vld [vmem:[#allocation6 + $0x40] sm:$0xff]
    %v92 = vld [vmem:[#allocation6 + $0x48] sm:$0xff]
    %v93 = vld [vmem:[#allocation6 + $0x50] sm:$0xff]
    %v94 = vld [vmem:[#allocation6 + $0x58] sm:$0xff]
    %v95 = vld [vmem:[#allocation6 + $0x60] sm:$0xff]
    %v96 = vld [vmem:[#allocation6 + $0x68] sm:$0xff]
    %v97 = vld [vmem:[#allocation6 + $0x70] sm:$0xff]
    %v98 = vld [vmem:[#allocation6 + $0x78] sm:$0xff]
    %v99 = vpack.c.bf16 %v84, %v83
    %v100 = vpack.c.bf16 %v86, %v85
    %v101 = vpack.c.bf16 %v88, %v87
    %v102 = vpack.c.bf16 %v90, %v89
    %v103 = vpack.c.bf16 %v92, %v91
    %v104 = vpack.c.bf16 %v94, %v93
    %v105 = vpack.c.bf16 %v96, %v95
    %v106 = vpack.c.bf16 %v98, %v97
    %v107 = vld [vmem:[%s2] sm:$0x1]
    %v109 = vlaneseq
    %v110 = vshrl.u32 %v109, 7
    %v111 = vsub.s32 0, %v110
    %v112 = vrot.slane %v107, %v111
    %114 = vmatprep.subr.bf16.mxu0 0
    %115 = vmatpush1.bf16.msra.mxu0 %v106
    %116 = vmatprep.subr.bf16.mxu0 0
    %117 = vmatpush1.bf16.msra.mxu0 %v105
    %118 = vmatprep.subr.bf16.mxu0 0
    %119 = vmatpush1.bf16.msra.mxu0 %v104
    %120 = vmatprep.subr.bf16.mxu0 0
    %121 = vmatpush1.bf16.msra.mxu0 %v103
    %122 = vmatprep.subr.bf16.mxu0 0
    %123 = vmatpush1.bf16.msra.mxu0 %v102
    %124 = vmatprep.subr.bf16.mxu0 0
    %125 = vmatpush1.bf16.msra.mxu0 %v101
    %126 = vmatprep.subr.bf16.mxu0 0
    %127 = vmatpush1.bf16.msra.mxu0 %v100
    %128 = vmatprep.subr.bf16.mxu0 0
    %129 = vmatpush1.bf16.msra.mxu0 %v99
    %130 = vmatprep.subr.bf16.mxu0 0
    %131 = vmatpush2.bf16.msra.mxu0 0
    %132 = vmatprep.subr.bf16.mxu0 0
    %133 = vmatpush2.bf16.msra.mxu0 0
    %134 = vmatprep.subr.bf16.mxu0 0
    %135 = vmatpush2.bf16.msra.mxu0 0
    %136 = vmatprep.subr.bf16.mxu0 0
    %137 = vmatpush2.bf16.msra.mxu0 0
    %138 = vmatprep.subr.bf16.mxu0 0
    %139 = vmatpush2.bf16.msra.mxu0 0
    %140 = vmatprep.subr.bf16.mxu0 0
    %141 = vmatpush2.bf16.msra.mxu0 0
    %142 = vmatprep.subr.bf16.mxu0 0
    %143 = vmatpush2.bf16.msra.mxu0 0
    %144 = vmatprep.subr.bf16.mxu0 0
    %145 = vmatpush2.bf16.msra.mxu0 0
    %146 = vmatprep.mubr.bf16.mxu0 0
    %147 = vmatmul.mubr.bf16.gmra.mxu0 %v82
    %v148 = vpop.f32.mrf.mxu0
    %v149 = vadd.f32 %v112, %v148
    %v150 = vpop.f32.mrf.mxu0
    %v151 = vpop.f32.mrf.mxu0
    %v152 = vpop.f32.mrf.mxu0
    %153 = vdwg.mxu0
    %vm154 = vcmp.ge.f32.partialorder %v149, 0.0
    %v155 = vmul.f32 %v149, 0.01
    %v156 = vsel %vm154, %v149, %v155
    %v157 = vpack.c.bf16 %v156, %v156
    %v158 = vld [vmem:[#allocation8] sm:$0xff]
    %v159 = vld [vmem:[#allocation8 + $0x8] sm:$0xff]
    %v160 = vld [vmem:[#allocation8 + $0x10] sm:$0xff]
    %v161 = vld [vmem:[#allocation8 + $0x18] sm:$0xff]
    %v162 = vld [vmem:[#allocation8 + $0x20] sm:$0xff]
    %v163 = vld [vmem:[#allocation8 + $0x28] sm:$0xff]
    %v164 = vld [vmem:[#allocation8 + $0x30] sm:$0xff]
    %v165 = vld [vmem:[#allocation8 + $0x38] sm:$0xff]
    %v166 = vld [vmem:[#allocation8 + $0x40] sm:$0xff]
    %v167 = vld [vmem:[#allocation8 + $0x48] sm:$0xff]
    %v168 = vld [vmem:[#allocation8 + $0x50] sm:$0xff]
    %v169 = vld [vmem:[#allocation8 + $0x58] sm:$0xff]
    %v170 = vld [vmem:[#allocation8 + $0x60] sm:$0xff]
    %v171 = vld [vmem:[#allocation8 + $0x68] sm:$0xff]
    %v172 = vld [vmem:[#allocation8 + $0x70] sm:$0xff]
    %v173 = vld [vmem:[#allocation8 + $0x78] sm:$0xff]
    %v174 = vpack.c.bf16 %v159, %v158
    %v175 = vpack.c.bf16 %v161, %v160
    %v176 = vpack.c.bf16 %v163, %v162
    %v177 = vpack.c.bf16 %v165, %v164
    %v178 = vpack.c.bf16 %v167, %v166
    %v179 = vpack.c.bf16 %v169, %v168
    %v180 = vpack.c.bf16 %v171, %v170
    %v181 = vpack.c.bf16 %v173, %v172
    %v182 = vld [vmem:[%s4] sm:$0x1]
    %v184 = vlaneseq
    %v185 = vshrl.u32 %v184, 7
    %v186 = vsub.s32 0, %v185
    %v187 = vrot.slane %v182, %v186
    %189 = vmatprep.subr.bf16.mxu0 0
    %190 = vmatpush1.bf16.msra.mxu0 %v181
    %191 = vmatprep.subr.bf16.mxu0 0
    %192 = vmatpush1.bf16.msra.mxu0 %v180
    %193 = vmatprep.subr.bf16.mxu0 0
    %194 = vmatpush1.bf16.msra.mxu0 %v179
    %195 = vmatprep.subr.bf16.mxu0 0
    %196 = vmatpush1.bf16.msra.mxu0 %v178
    %197 = vmatprep.subr.bf16.mxu0 0
    %198 = vmatpush1.bf16.msra.mxu0 %v177
    %199 = vmatprep.subr.bf16.mxu0 0
    %200 = vmatpush1.bf16.msra.mxu0 %v176
    %201 = vmatprep.subr.bf16.mxu0 0
    %202 = vmatpush1.bf16.msra.mxu0 %v175
    %203 = vmatprep.subr.bf16.mxu0 0
    %204 = vmatpush1.bf16.msra.mxu0 %v174
    %205 = vmatprep.subr.bf16.mxu0 0
    %206 = vmatpush2.bf16.msra.mxu0 0
    %207 = vmatprep.subr.bf16.mxu0 0
    %208 = vmatpush2.bf16.msra.mxu0 0
    %209 = vmatprep.subr.bf16.mxu0 0
    %210 = vmatpush2.bf16.msra.mxu0 0
    %211 = vmatprep.subr.bf16.mxu0 0
    %212 = vmatpush2.bf16.msra.mxu0 0
    %213 = vmatprep.subr.bf16.mxu0 0
    %214 = vmatpush2.bf16.msra.mxu0 0
    %215 = vmatprep.subr.bf16.mxu0 0
    %216 = vmatpush2.bf16.msra.mxu0 0
    %217 = vmatprep.subr.bf16.mxu0 0
    %218 = vmatpush2.bf16.msra.mxu0 0
    %219 = vmatprep.subr.bf16.mxu0 0
    %220 = vmatpush2.bf16.msra.mxu0 0
    %221 = vmatprep.mubr.bf16.mxu0 0
    %222 = vmatmul.mubr.bf16.gmra.mxu0 %v157
    %v223 = vpop.f32.mrf.mxu0
    %v224 = vadd.f32 %v187, %v223
    %v225 = vpop.f32.mrf.mxu0
    %v226 = vpop.f32.mrf.mxu0
    %v227 = vpop.f32.mrf.mxu0
    %228 = vdwg.mxu0
    %vm229 = vcmp.ge.f32.partialorder %v224, 0.0
    %v230 = vmul.f32 %v224, 0.01
    %v231 = vsel %vm229, %v224, %v230
    %v232 = vpack.c.bf16 %v231, %v231
    %v233 = vld [vmem:[#allocation9] sm:$0xff]
    %v234 = vld [vmem:[#allocation9 + $0x8] sm:$0xff]
    %v235 = vld [vmem:[#allocation9 + $0x10] sm:$0xff]
    %v236 = vld [vmem:[#allocation9 + $0x18] sm:$0xff]
    %v237 = vld [vmem:[#allocation9 + $0x20] sm:$0xff]
    %v238 = vld [vmem:[#allocation9 + $0x28] sm:$0xff]
    %v239 = vld [vmem:[#allocation9 + $0x30] sm:$0xff]
    %v240 = vld [vmem:[#allocation9 + $0x38] sm:$0xff]
    %v241 = vld [vmem:[#allocation9 + $0x40] sm:$0xff]
    %v242 = vld [vmem:[#allocation9 + $0x48] sm:$0xff]
    %v243 = vld [vmem:[#allocation9 + $0x50] sm:$0xff]
    %v244 = vld [vmem:[#allocation9 + $0x58] sm:$0xff]
    %v245 = vld [vmem:[#allocation9 + $0x60] sm:$0xff]
    %v246 = vld [vmem:[#allocation9 + $0x68] sm:$0xff]
    %v247 = vld [vmem:[#allocation9 + $0x70] sm:$0xff]
    %v248 = vld [vmem:[#allocation9 + $0x78] sm:$0xff]
    %v249 = vpack.c.bf16 %v234, %v233
    %v250 = vpack.c.bf16 %v236, %v235
    %v251 = vpack.c.bf16 %v238, %v237
    %v252 = vpack.c.bf16 %v240, %v239
    %v253 = vpack.c.bf16 %v242, %v241
    %v254 = vpack.c.bf16 %v244, %v243
    %v255 = vpack.c.bf16 %v246, %v245
    %v256 = vpack.c.bf16 %v248, %v247
    %v257 = vld [vmem:[%s6] sm:$0x1]
    %v259 = vlaneseq
    %v260 = vshrl.u32 %v259, 7
    %v261 = vsub.s32 0, %v260
    %v262 = vrot.slane %v257, %v261
    %264 = vmatprep.subr.bf16.mxu0 0
    %265 = vmatpush1.bf16.msra.mxu0 %v256
    %266 = vmatprep.subr.bf16.mxu0 0
    %267 = vmatpush1.bf16.msra.mxu0 %v255
    %268 = vmatprep.subr.bf16.mxu0 0
    %269 = vmatpush1.bf16.msra.mxu0 %v254
    %270 = vmatprep.subr.bf16.mxu0 0
    %271 = vmatpush1.bf16.msra.mxu0 %v253
    %272 = vmatprep.subr.bf16.mxu0 0
    %273 = vmatpush1.bf16.msra.mxu0 %v252
    %274 = vmatprep.subr.bf16.mxu0 0
    %275 = vmatpush1.bf16.msra.mxu0 %v251
    %276 = vmatprep.subr.bf16.mxu0 0
    %277 = vmatpush1.bf16.msra.mxu0 %v250
    %278 = vmatprep.subr.bf16.mxu0 0
    %279 = vmatpush1.bf16.msra.mxu0 %v249
    %280 = vmatprep.subr.bf16.mxu0 0
    %281 = vmatpush2.bf16.msra.mxu0 0
    %282 = vmatprep.subr.bf16.mxu0 0
    %283 = vmatpush2.bf16.msra.mxu0 0
    %284 = vmatprep.subr.bf16.mxu0 0
    %285 = vmatpush2.bf16.msra.mxu0 0
    %286 = vmatprep.subr.bf16.mxu0 0
    %287 = vmatpush2.bf16.msra.mxu0 0
    %288 = vmatprep.subr.bf16.mxu0 0
    %289 = vmatpush2.bf16.msra.mxu0 0
    %290 = vmatprep.subr.bf16.mxu0 0
    %291 = vmatpush2.bf16.msra.mxu0 0
    %292 = vmatprep.subr.bf16.mxu0 0
    %293 = vmatpush2.bf16.msra.mxu0 0
    %294 = vmatprep.subr.bf16.mxu0 0
    %295 = vmatpush2.bf16.msra.mxu0 0
    %296 = vmatprep.mubr.bf16.mxu0 0
    %297 = vmatmul.mubr.bf16.gmra.mxu0 %v232
    %v298 = vpop.f32.mrf.mxu0
    %v299 = vadd.f32 %v262, %v298
    %v300 = vpop.f32.mrf.mxu0
    %v301 = vpop.f32.mrf.mxu0
    %v302 = vpop.f32.mrf.mxu0
    %303 = vdwg.mxu0
    %304 = vst [vmem:[#allocation11] sm:$0xff] %v299
    // Predicated region
    $region46: #{tpu_custom_call.1} parent=1 // pred_check
      _
    $region47: #{tpu_custom_call.1} parent=1 // pred_check_branch
      %306 = sbr.rel (0) target = $region49
    $region48: #{tpu_custom_call.1} parent=1 // pred_region
      %s308 = ssub.s32 128, 128
      %309 = vsyncadd [#allocation5], %s308
      %s311 = sshll.u32 [#allocation11], 4
      %s312 = int_to_ptr.vmem [resolvable:$true] %s311
      %314 = dma.vmem_to_hbm [thread:$0]  %s312, 128, %s7, [#allocation5]
    $region49: #{tpu_custom_call.1} parent=1 // pred_fallthru
      _
    // Predicated region
    $region50: #{tpu_custom_call.1} parent=1 // pred_check
      _
    $region51: #{tpu_custom_call.1} parent=1 // pred_check_branch
      %316 = sbr.rel (0) target = $region53
    $region52: #{tpu_custom_call.1} parent=1 // pred_region
      %317 = dma.done [#allocation5], 128
    $region53: #{tpu_custom_call.1} parent=1 // pred_fallthru
      _
    %318 = vsyncpa [#allocation4], 1
    %319 = vsyncpa [#allocation7], 1
    %320 = vsyncpa [#allocation10], 1
    %321 = vsyncpa [#allocation5], 1

</llo_original>
